<compile_context>
chip_gen: v6e
topology: v6e:2x2x1
jax: 0.10.0
libtpu: 0.0.40
codegen_flags: <defaults>
</compile_context>

<pallas_src>
import jax
import jax.numpy as jnp
import numpy as np
from jax.experimental import pallas as pl
from jax.experimental.pallas import tpu as pltpu


# ------------------------------ small helpers -------------------------------

def _round_up(a, b):
    return ((a + b - 1) // b) * b


def _largest_aligned_divisor(total, cap, unit):
    """Largest multiple of `unit` that divides `total` and is <= max(cap, unit).

    `total` must itself be a multiple of `unit`."""
    cap = max(cap, unit)
    best = unit
    t = unit
    while t <= min(cap, total):
        if total % t == 0:
            best = t
        t += unit
    return best


def _guess_num_tensorcores():
    """2 TensorCores per device on v4 / v5p / v7x, else 1 (v5e, v6e)."""
    try:
        kind = jax.devices()[0].device_kind.lower()
    except Exception:
        return 1
    for tag in ("v4", "v5p", "v7"):
        if tag in kind:
            return 2
    return 1


# ------------------------------ Pallas kernels ------------------------------

def _matmul_kernel_acc(x_ref, w_ref, o_ref, acc_ref):
    """o[i, j] = sum_k x[i, k] @ w[k, j]; k is the innermost ("arbitrary") axis."""

    @pl.when(pl.program_id(2) == 0)
    def _():
        acc_ref[...] = jnp.zeros_like(acc_ref)

    w = w_ref[...]
    if w.dtype != x_ref.dtype:          # narrow mask storage (e.g. int8) -> upcast
        w = w.astype(x_ref.dtype)
    acc_ref[...] += jnp.dot(x_ref[...], w, preferred_element_type=jnp.float32)

    @pl.when(pl.program_id(2) == pl.num_programs(2) - 1)
    def _():
        o_ref[...] = acc_ref[...].astype(o_ref.dtype)


def _matmul_kernel_nored(x_ref, w_ref, o_ref):
    """Single reduction step: write the dot straight to the output block."""
    w = w_ref[...]
    if w.dtype != x_ref.dtype:
        w = w.astype(x_ref.dtype)
    o_ref[...] = jnp.dot(
        x_ref[...], w, preferred_element_type=jnp.float32
    ).astype(o_ref.dtype)


# --------------------------- tiled matmul wrapper ----------------------------

def _padded_matmul_pallas(x, w_padded, n_out, *, compute_dtype, out_dtype,
                          tm_cap=512, tn_cap=512, tk_cap=1024, num_cores=1):
    """(B, K) @ (Kp, Np) -> (B, n_out).  w_padded is already cast & 128-padded."""
    B, K = x.shape
    Kp, Np = w_padded.shape
    assert Kp >= K and Kp % 128 == 0 and Np % 128 == 0

    itemsize = np.dtype(compute_dtype).itemsize
    sublane = {4: 8, 2: 16, 1: 32}[itemsize]

    # tm: a single i tile for batches up to tm_cap rows, so the (dominant)
    # weight slab is streamed from HBM exactly once per call.
    Bp = _round_up(B, sublane)
    if Bp <= tm_cap:
        tm = Bp
    else:
        tm = _round_up(tm_cap, sublane)
        Bp = _round_up(B, tm)
    ni = Bp // tm

    # tn: lane-dense output tiles; ensure >=2 parallel tiles on 2-TC chips so
    # the second TensorCore gets work (v4/v5p/v7x).  On 1-TC chips keep tiles big.
    tn_limit = min(tn_cap, Np)
    if num_cores >= 2 and ni < 2 and Np >= 2 * 128:
        tn_limit = min(tn_limit, Np // 2)
    tn = _largest_aligned_divisor(Np, tn_limit, 128)
    nj = Np // tn

    # tk: as few reduction steps as possible; double-buffered blocks stay far
    # below the 32 MiB scoped-VMEM default on v5e/v6e/v7x at these caps.
    tk = _largest_aligned_divisor(Kp, min(tk_cap, Kp), 128)
    nk = Kp // tk

    xp = jnp.pad(x.astype(compute_dtype), ((0, Bp - B), (0, Kp - K)))

    w_itemsize = np.dtype(w_padded.dtype).itemsize
    out_itemsize = np.dtype(out_dtype).itemsize
    cost = pl.CostEstimate(
        flops=2 * Bp * Kp * Np,
        transcendentals=0,
        bytes_accessed=(ni * Kp * Np * w_itemsize        # weight re-read per i tile
                        + nj * Bp * Kp * itemsize        # x re-read per j tile
                        + Bp * Np * out_itemsize),
    )

    # TODO(synk): if profiles show exposed DMA on the k sweep, add
    # pipeline_mode=pl.Buffered(3) on the weight BlockSpec.
    if nk == 1:
        out_padded = pl.pallas_call(
            _matmul_kernel_nored,
            out_shape=jax.ShapeDtypeStruct((Bp, Np), out_dtype),
            grid_spec=pltpu.PrefetchScalarGridSpec(
                num_scalar_prefetch=0,
                grid=(ni, nj),
                in_specs=[
                    pl.BlockSpec((tm, tk), lambda i, j: (i, 0)),
                    pl.BlockSpec((tk, tn), lambda i, j: (0, j)),
                ],
                out_specs=pl.BlockSpec((tm, tn), lambda i, j: (i, j)),
            ),
            compiler_params=pltpu.CompilerParams(
                dimension_semantics=("parallel", "parallel")),
            cost_estimate=cost,
        )(xp, w_padded)
    else:
        out_padded = pl.pallas_call(
            _matmul_kernel_acc,
            out_shape=jax.ShapeDtypeStruct((Bp, Np), out_dtype),
            grid_spec=pltpu.PrefetchScalarGridSpec(
                num_scalar_prefetch=0,
                grid=(ni, nj, nk),
                in_specs=[
                    pl.BlockSpec((tm, tk), lambda i, j, k: (i, k)),
                    pl.BlockSpec((tk, tn), lambda i, j, k: (k, j)),
                ],
                out_specs=pl.BlockSpec((tm, tn), lambda i, j, k: (i, j)),
                scratch_shapes=[pltpu.VMEM((tm, tn), jnp.float32)],
            ),
            compiler_params=pltpu.CompilerParams(
                dimension_semantics=("parallel", "parallel", "arbitrary")),
            cost_estimate=cost,
        )(xp, w_padded)

    return out_padded[:B, :n_out]


# ----------------------- Deterministic parameter init -----------------------

def init_w_output(neurons, input_output_layer_size, code_pcm):
    """Build (w_output, w_output_mask), both (neurons, N).

    neurons = number of Tanner-graph edges of code_pcm (row-major edge
    enumeration); mask[e, v] = 1 iff edge e touches variable node v.
    w_output is initialized to ones (deterministic)."""
    pcm = np.asarray(code_pcm)
    n_checks, n_vars = pcm.shape
    assert n_vars == input_output_layer_size
    rows, cols = np.nonzero(pcm)              # row-major order
    assert rows.shape[0] == neurons, f"neurons={neurons}, pcm edges={rows.shape[0]}"
    mask = np.zeros((neurons, input_output_layer_size), dtype=np.float32)
    mask[np.arange(neurons), cols] = 1.0
    w_output = np.ones((neurons, input_output_layer_size), dtype=np.float32)
    return jnp.asarray(w_output), jnp.asarray(mask)


# ------------------------------- OutputLayer --------------------------------

class OutputLayerPallas:
    """Pallas-TPU version of the PyTorch OutputLayer.

    forward(x, mask_only):
        mask_only -> x @ w_output_mask
        else      -> x @ (w_output_mask * output_weights)
    """

    def __init__(self, neurons, input_output_layer_size, code_pcm, *,
                 compute_dtype=jnp.bfloat16, mask_storage_dtype=None,
                 tm_cap=512, tn_cap=512, tk_cap=1024,
                 min_pallas_weight_elems=512 * 512):
        w_output, w_output_mask = init_w_output(
            neurons=neurons, input_output_layer_size=input_output_layer_size,
            code_pcm=code_pcm)
        self.output_weights = w_output            # learnable parameter (K, N)
        self.w_output_mask = w_output_mask        # constant 0/1 mask (K, N)
        self.neurons = neurons
        self.n_out = input_output_layer_size
        self.compute_dtype = compute_dtype
        self.mask_storage_dtype = (mask_storage_dtype
                                   if mask_storage_dtype is not None
                                   else compute_dtype)
        self.tm_cap, self.tn_cap, self.tk_cap = tm_cap, tn_cap, tk_cap
        self.min_pallas_weight_elems = min_pallas_weight_elems

        mask_np = np.asarray(w_output_mask)
        nnz_per_row = (mask_np != 0).sum(axis=1)
        # One nonzero per edge row => x @ (mask*W) == (x * w_vec) @ mask exactly.
        self._structured = bool(np.all(nnz_per_row <= 1))
        self._edge_cols = jnp.asarray(
            np.argmax(mask_np != 0, axis=1).astype(np.int32))

        # Cache the cast + 128-padded mask ONCE (it never changes).  The 0/1
        # values are exact in bf16 / int8 storage.
        K, N = mask_np.shape
        self._Kp = _round_up(K, 128)
        self._Np = _round_up(N, 128)
        mask_padded = np.zeros((self._Kp, self._Np), dtype=np.float32)
        mask_padded[:K, :N] = mask_np
        self._mask_padded = jnp.asarray(mask_padded).astype(self.mask_storage_dtype)

        self._num_cores = _guess_num_tensorcores()

    def __call__(self, x, mask_only=False, *, force_pallas=False):
        B, K = x.shape
        assert K == self.neurons, (K, self.neurons)
        out_dtype = x.dtype

        if mask_only:
            xs = x
            w_padded = self._mask_padded
        elif self._structured:
            # Collapse the (K, N) parameter to the (K,) per-edge weight vector
            # and scale x on the VPU (tiny); the mask stays a cached constant.
            w_vec = self.output_weights[jnp.arange(K), self._edge_cols]
            xs = x * w_vec[None, :].astype(x.dtype)
            w_padded = self._mask_padded
        else:
            # Generic (non one-hot mask) fallback: dense fold per call.
            xs = x
            w_eff = (self.w_output_mask * self.output_weights).astype(
                self.compute_dtype)
            w_padded = jnp.pad(
                w_eff, ((0, self._Kp - K), (0, self._Np - self.n_out)))

        # Small-problem fallback: 128-padding + pallas_call fixed overhead is
        # not worth it for toy codes; fused XLA wins there.
        if not force_pallas and self._Kp * self._Np <= self.min_pallas_weight_elems:
            if mask_only or self._structured:
                return jnp.matmul(xs, self.w_output_mask).astype(out_dtype)
            return jnp.matmul(
                x, self.w_output_mask * self.output_weights).astype(out_dtype)

        return _padded_matmul_pallas(
            xs, w_padded, self.n_out,
            compute_dtype=self.compute_dtype, out_dtype=out_dtype,
            tm_cap=self.tm_cap, tn_cap=self.tn_cap, tk_cap=self.tk_cap,
            num_cores=self._num_cores)


# ---------------------------------- Main -------------------------------------

if __name__ == "__main__":
    key = jax.random.PRNGKey(0)
    k1, k2, k3, k4, k5, k6 = jax.random.split(key, 6)

    # ---- Case 1: toy PCM (B=2, neurons=8, N=8), f32 compute ----------------
    code_pcm = np.array(
        [
            [1, 1, 0, 0, 0, 0, 0, 0],
            [0, 0, 1, 1, 0, 0, 0, 0],
            [0, 0, 0, 0, 1, 1, 0, 0],
            [0, 0, 0, 0, 0, 0, 1, 1],
        ],
        dtype=np.float32,
    )
    n_vars = code_pcm.shape[1]
    neurons = int(code_pcm.sum())
    batch = 2

    layer = OutputLayerPallas(neurons, n_vars, code_pcm,
                              compute_dtype=jnp.float32)
    layer.output_weights = layer.output_weights + 0.1 * jax.random.normal(
        k1, layer.output_weights.shape, dtype=jnp.float32)
    x = jax.random.normal(k2, (batch, neurons), dtype=jnp.float32)

    ref = x @ (layer.w_output_mask * layer.output_weights)
    ref_mask = x @ layer.w_output_mask

    out_fb = jax.block_until_ready(layer(x))                       # XLA fallback
    out_pl = jax.block_until_ready(layer(x, force_pallas=True))    # Pallas path
    out_mask = jax.block_until_ready(layer(x, mask_only=True, force_pallas=True))

    np.testing.assert_allclose(np.asarray(out_fb), np.asarray(ref),
                               rtol=1e-5, atol=1e-5)
    np.testing.assert_allclose(np.asarray(out_pl), np.asarray(ref),
                               rtol=1e-5, atol=1e-5)
    np.testing.assert_allclose(np.asarray(out_mask), np.asarray(ref_mask),
                               rtol=1e-5, atol=1e-5)

    # ---- Case 2: larger PCM (512 edges, N=128), several dtype paths --------
    rng = np.random.RandomState(0)
    n_checks_b, n_vars_b, ones_per_row = 64, 128, 8
    pcm_big = np.zeros((n_checks_b, n_vars_b), dtype=np.float32)
    for c in range(n_checks_b):
        cols = rng.choice(n_vars_b, size=ones_per_row, replace=False)
        pcm_big[c, cols] = 1.0
    neurons_big = int(pcm_big.sum())  # 512 edges

    weights_big = jnp.ones((neurons_big, n_vars_b), jnp.float32) + \
        0.1 * jax.random.normal(k3, (neurons_big, n_vars_b), dtype=jnp.float32)
    x_big = jax.random.normal(k4, (16, neurons_big), dtype=jnp.float32)

    # f32 compute, tk_cap=128 -> exercises the multi-step k accumulator kernel.
    layer_f32 = OutputLayerPallas(neurons_big, n_vars_b, pcm_big,
                                  compute_dtype=jnp.float32, tk_cap=128)
    layer_f32.output_weights = weights_big
    # bf16 compute (default), single k step kernel.
    layer_bf16 = OutputLayerPallas(neurons_big, n_vars_b, pcm_big)
    layer_bf16.output_weights = weights_big
    # int8 mask storage (exact 0/1), upcast to bf16 inside the kernel: 4x less
    # weight HBM traffic on any generation without the integer MXU path.
    layer_i8 = OutputLayerPallas(neurons_big, n_vars_b, pcm_big,
                                 mask_storage_dtype=jnp.int8)
    layer_i8.output_weights = weights_big

    ref_big = x_big @ (layer_f32.w_output_mask * weights_big)
    ref_big_mask = x_big @ layer_f32.w_output_mask

    out_f32 = jax.block_until_ready(layer_f32(x_big, force_pallas=True))
    out_bf16 = jax.block_until_ready(layer_bf16(x_big, force_pallas=True))
    out_i8 = jax.block_until_ready(layer_i8(x_big, force_pallas=True))
    out_bf16_mask = jax.block_until_ready(
        layer_bf16(x_big, mask_only=True, force_pallas=True))

    np.testing.assert_allclose(np.asarray(out_f32), np.asarray(ref_big),
                               rtol=1e-5, atol=1e-5)
    np.testing.assert_allclose(np.asarray(out_bf16), np.asarray(ref_big),
                               rtol=3e-2, atol=3e-2)
    np.testing.assert_allclose(np.asarray(out_i8), np.asarray(ref_big),
                               rtol=3e-2, atol=3e-2)
    np.testing.assert_allclose(np.asarray(out_bf16_mask), np.asarray(ref_big_mask),
                               rtol=3e-2, atol=3e-2)

    # ---- Case 3: wide PCM (N=200 -> Np=256) exercising the 2-TC n split ----
    rng2 = np.random.RandomState(1)
    n_checks_w, n_vars_w, ones_per_row_w = 32, 200, 6
    pcm_wide = np.zeros((n_checks_w, n_vars_w), dtype=np.float32)
    for c in range(n_checks_w):
        cols = rng2.choice(n_vars_w, size=ones_per_row_w, replace=False)
        pcm_wide[c, cols] = 1.0
    neurons_w = int(pcm_wide.sum())  # 192 edges

    layer_wide = OutputLayerPallas(neurons_w, n_vars_w, pcm_wide)
    layer_wide._num_cores = 2        # force the megacore tn split on any host
    layer_wide.output_weights = jnp.ones((neurons_w, n_vars_w), jnp.float32) + \
        0.1 * jax.random.normal(k5, (neurons_w, n_vars_w), dtype=jnp.float32)
    x_wide = jax.random.normal(k6, (8, neurons_w), dtype=jnp.float32)

    ref_wide = x_wide @ (layer_wide.w_output_mask * layer_wide.output_weights)
    out_wide = jax.block_until_ready(layer_wide(x_wide, force_pallas=True))
    np.testing.assert_allclose(np.asarray(out_wide), np.asarray(ref_wide),
                               rtol=3e-2, atol=3e-2)

    print("KERNEL_OK")
</pallas_src>

<mosaic_0001>
module attributes {stable_mosaic.version = 11 : i64} {
  func.func @_matmul_kernel_nored(%arg0: i32, %arg1: i32, %arg2: memref<8x128xf32, #tpu.memory_space<vmem>>, %arg3: memref<128x128xf32, #tpu.memory_space<vmem>>, %arg4: memref<8x128xf32, #tpu.memory_space<vmem>>) attributes {dimension_semantics = [#tpu.dimension_semantics<parallel>, #tpu.dimension_semantics<parallel>], iteration_bounds = array<i64: 1, 1>, scalar_prefetch = 0 : i64, scratch_operands = 0 : i64, tpu.core_type = #tpu.core_type<tc>, window_params = [{transform_indices = @transform_0, window_bounds = array<i64: 8, 128>}, {transform_indices = @transform_1, window_bounds = array<i64: 128, 128>}, {transform_indices = @transform_2, window_bounds = array<i64: 8, 128>}]} {
    %c0 = arith.constant 0 : index
    %c0_0 = arith.constant 0 : index
    %0 = vector.load %arg3[%c0, %c0_0] : memref<128x128xf32, #tpu.memory_space<vmem>>, vector<128x128xf32>
    %c0_1 = arith.constant 0 : index
    %c0_2 = arith.constant 0 : index
    %1 = vector.load %arg2[%c0_1, %c0_2] : memref<8x128xf32, #tpu.memory_space<vmem>>, vector<8x128xf32>
    %cst = arith.constant dense<0.000000e+00> : vector<8x128xf32>
    %2 = tpu.matmul %1, %0, %cst {dimension_numbers = #tpu.dot_dimension_numbers<[1], [0], [0], [1], [0, 0, 1, 1], [], []>} : vector<8x128xf32>, vector<128x128xf32>, vector<8x128xf32> -> vector<8x128xf32>
    %c0_3 = arith.constant 0 : index
    %c0_4 = arith.constant 0 : index
    %3 = vector.load %arg4[%c0_3, %c0_4] : memref<8x128xf32, #tpu.memory_space<vmem>>, vector<8x128xf32>
    tpu.vector_store %arg4[%c0_3, %c0_4], %2 {strides = array<i32>} : memref<8x128xf32, #tpu.memory_space<vmem>>, vector<8x128xf32>,
    return
  }
  func.func @transform_0(%arg0: i32, %arg1: i32) -> (i32, i32) {
    %c0_i32 = arith.constant 0 : i32
    %c0_i32_0 = arith.constant 0 : i32
    return %arg0, %c0_i32 : i32, i32
  }
  func.func @transform_1(%arg0: i32, %arg1: i32) -> (i32, i32) {
    %c0_i32 = arith.constant 0 : i32
    %c0_i32_0 = arith.constant 0 : i32
    return %c0_i32, %arg1 : i32, i32
  }
  func.func @transform_2(%arg0: i32, %arg1: i32) -> (i32, i32) {
    %c0_i32 = arith.constant 0 : i32
    return %arg0, %arg1 : i32, i32
  }
}

</mosaic_0001>

<llo_original>
// kernel: tpu_custom_call.1
$region0: #{tpu_custom_call.1}
  #allocation0 [shape = 'u32[]', space=smem, size = 0x4, offset = 0x4, fixed_abs, tag = 'smem constant byte address 0x4 - core index']
  #allocation1 [shape = 'u32[144,128]{1,0:T(1,128)}', space=vmem, size = 0x12000, scoped, tag = 'internal scratch']
  %s0 = inlined_call_operand.hbm [shape: f32[8,128], index: 0, kind: input, shape index: {}]
  %s1 = inlined_call_operand.hbm [shape: f32[128,128], index: 1, kind: input, shape index: {}]
  %s2 = inlined_call_operand.hbm [shape: f32[8,128], index: 2, kind: output, shape index: {}]
  %s3 = sld [smem:[#allocation0]]
  $region26: #{tpu_custom_call.1} parent=0
    _
  %s5 = ssub.s32 1, %s3
  %s6 = scalar_select 0, %s5, %s3
  $region1: #{tpu_custom_call.1} parent=0
    #allocation2 [shape = 'u8[4096]{0}', space=vmem, size = 0x1000, scoped, tag = 'input window, operand 0, single buffered']
    #allocation3 [shape = 's32[1]{0}', space=sflag, size = 0x4, scoped, tag = 'scoped memory for tpu_custom_call.1']
    #allocation4 [shape = 's32[1]{0}', space=sflag, size = 0x4, scoped, tag = 'scoped memory for tpu_custom_call.1']
    #allocation5 [shape = 'u8[65536]{0}', space=vmem, size = 0x10000, scoped, tag = 'input window, operand 1, single buffered']
    #allocation6 [shape = 's32[1]{0}', space=sflag, size = 0x4, scoped, tag = 'scoped memory for tpu_custom_call.1']
    #allocation7 [shape = 'u8[4096]{0}', space=vmem, size = 0x1000, scoped, tag = 'output window, operand 0, single buffered']
    %7 = vsyncpa [#allocation3], 0
    %8 = vsyncpa [#allocation6], 0
    %9 = vsyncpa [#allocation4], 0
    // Predicated region
    $region2: #{tpu_custom_call.1} parent=1 // pred_check
      _
    $region3: #{tpu_custom_call.1} parent=1 // pred_check_branch
      %11 = sbr.rel (0) target = $region5
    $region4: #{tpu_custom_call.1} parent=1 // pred_region
      %s13 = ssub.s32 128, 128
      %14 = vsyncadd [#allocation3], %s13
      %s16 = sshll.u32 [#allocation2], 4
      %s17 = int_to_ptr.vmem [resolvable:$true] %s16
      %19 = dma.hbm_to_vmem [thread:$0]  %s0, 128, %s17, [#allocation3]
    $region5: #{tpu_custom_call.1} parent=1 // pred_fallthru
      _
    // Predicated region
    $region6: #{tpu_custom_call.1} parent=1 // pred_check
      _
    $region7: #{tpu_custom_call.1} parent=1 // pred_check_branch
      %21 = sbr.rel (0) target = $region9
    $region8: #{tpu_custom_call.1} parent=1 // pred_region
      %s23 = ssub.s32 2048, 2048
      %24 = vsyncadd [#allocation6], %s23
      %s25 = sshll.u32 [#allocation5], 4
      %s26 = int_to_ptr.vmem [resolvable:$true] %s25
      %31 = dma.hbm_to_vmem [thread:$0]  %s1, 2048, %s26, [#allocation6], 128, 128, 8
    $region9: #{tpu_custom_call.1} parent=1 // pred_fallthru
      _
    // Predicated region
    $region10: #{tpu_custom_call.1} parent=1 // pred_check
      _
    $region11: #{tpu_custom_call.1} parent=1 // pred_check_branch
      %33 = sbr.rel (0) target = $region13
    $region12: #{tpu_custom_call.1} parent=1 // pred_region
      %34 = dma.done [#allocation3], 128
    $region13: #{tpu_custom_call.1} parent=1 // pred_fallthru
      _
    // Predicated region
    $region14: #{tpu_custom_call.1} parent=1 // pred_check
      _
    $region15: #{tpu_custom_call.1} parent=1 // pred_check_branch
      %36 = sbr.rel (0) target = $region17
    $region16: #{tpu_custom_call.1} parent=1 // pred_region
      %37 = dma.done [#allocation6], 2048
    $region17: #{tpu_custom_call.1} parent=1 // pred_fallthru
      _
    %v38 = vld [vmem:[#allocation5] sm:$0xff]
    %v39 = vld [vmem:[#allocation5 + $0x8] sm:$0xff]
    %v40 = vld [vmem:[#allocation5 + $0x10] sm:$0xff]
    %v41 = vld [vmem:[#allocation5 + $0x18] sm:$0xff]
    %v42 = vld [vmem:[#allocation5 + $0x20] sm:$0xff]
    %v43 = vld [vmem:[#allocation5 + $0x28] sm:$0xff]
    %v44 = vld [vmem:[#allocation5 + $0x30] sm:$0xff]
    %v45 = vld [vmem:[#allocation5 + $0x38] sm:$0xff]
    %v46 = vld [vmem:[#allocation5 + $0x40] sm:$0xff]
    %v47 = vld [vmem:[#allocation5 + $0x48] sm:$0xff]
    %v48 = vld [vmem:[#allocation5 + $0x50] sm:$0xff]
    %v49 = vld [vmem:[#allocation5 + $0x58] sm:$0xff]
    %v50 = vld [vmem:[#allocation5 + $0x60] sm:$0xff]
    %v51 = vld [vmem:[#allocation5 + $0x68] sm:$0xff]
    %v52 = vld [vmem:[#allocation5 + $0x70] sm:$0xff]
    %v53 = vld [vmem:[#allocation5 + $0x78] sm:$0xff]
    %v54 = vld [vmem:[#allocation2] sm:$0xff]
    %55 = vmatprep.subr.mxu0 0.0
    %56 = vmatpush1.msra.mxu0 %v53
    %57 = vmatprep.subr.mxu0 0.0
    %58 = vmatpush1.msra.mxu0 %v52
    %59 = vmatprep.subr.mxu0 0.0
    %60 = vmatpush1.msra.mxu0 %v51
    %61 = vmatprep.subr.mxu0 0.0
    %62 = vmatpush1.msra.mxu0 %v50
    %63 = vmatprep.subr.mxu0 0.0
    %64 = vmatpush1.msra.mxu0 %v49
    %65 = vmatprep.subr.mxu0 0.0
    %66 = vmatpush1.msra.mxu0 %v48
    %67 = vmatprep.subr.mxu0 0.0
    %68 = vmatpush1.msra.mxu0 %v47
    %69 = vmatprep.subr.mxu0 0.0
    %70 = vmatpush1.msra.mxu0 %v46
    %71 = vmatprep.subr.mxu0 0.0
    %72 = vmatpush1.msra.mxu0 %v45
    %73 = vmatprep.subr.mxu0 0.0
    %74 = vmatpush1.msra.mxu0 %v44
    %75 = vmatprep.subr.mxu0 0.0
    %76 = vmatpush1.msra.mxu0 %v43
    %77 = vmatprep.subr.mxu0 0.0
    %78 = vmatpush1.msra.mxu0 %v42
    %79 = vmatprep.subr.mxu0 0.0
    %80 = vmatpush1.msra.mxu0 %v41
    %81 = vmatprep.subr.mxu0 0.0
    %82 = vmatpush1.msra.mxu0 %v40
    %83 = vmatprep.subr.mxu0 0.0
    %84 = vmatpush1.msra.mxu0 %v39
    %85 = vmatprep.subr.mxu0 0.0
    %86 = vmatpush1.msra.mxu0 %v38
    %87 = vmatprep.subr.mxu0 0.0
    %88 = vmatpush2.msra.mxu0 0.0
    %89 = vmatprep.subr.mxu0 0.0
    %90 = vmatpush2.msra.mxu0 0.0
    %91 = vmatprep.subr.mxu0 0.0
    %92 = vmatpush2.msra.mxu0 0.0
    %93 = vmatprep.subr.mxu0 0.0
    %94 = vmatpush2.msra.mxu0 0.0
    %95 = vmatprep.subr.mxu0 0.0
    %96 = vmatpush2.msra.mxu0 0.0
    %97 = vmatprep.subr.mxu0 0.0
    %98 = vmatpush2.msra.mxu0 0.0
    %99 = vmatprep.subr.mxu0 0.0
    %100 = vmatpush2.msra.mxu0 0.0
    %101 = vmatprep.subr.mxu0 0.0
    %102 = vmatpush2.msra.mxu0 0.0
    %103 = vmatprep.subr.mxu0 0.0
    %104 = vmatpush2.msra.mxu0 0.0
    %105 = vmatprep.subr.mxu0 0.0
    %106 = vmatpush2.msra.mxu0 0.0
    %107 = vmatprep.subr.mxu0 0.0
    %108 = vmatpush2.msra.mxu0 0.0
    %109 = vmatprep.subr.mxu0 0.0
    %110 = vmatpush2.msra.mxu0 0.0
    %111 = vmatprep.subr.mxu0 0.0
    %112 = vmatpush2.msra.mxu0 0.0
    %113 = vmatprep.subr.mxu0 0.0
    %114 = vmatpush2.msra.mxu0 0.0
    %115 = vmatprep.subr.mxu0 0.0
    %116 = vmatpush2.msra.mxu0 0.0
    %117 = vmatprep.subr.mxu0 0.0
    %118 = vmatpush2.msra.mxu0 0.0
    %119 = vmatprep.mubr.f32.mxu0 0.0
    %120 = vmatmul.mubr.f32.gmra.mxu0 %v54
    %v121 = vpop.f32.mrf.mxu0
    %v122 = vadd.f32 0.0, %v121
    %v123 = vpop.f32.mrf.mxu0
    %124 = vdwg.mxu0
    %125 = vst [vmem:[#allocation7] sm:$0xff] %v122
    // Predicated region
    $region18: #{tpu_custom_call.1} parent=1 // pred_check
      _
    $region19: #{tpu_custom_call.1} parent=1 // pred_check_branch
      %127 = sbr.rel (0) target = $region21
    $region20: #{tpu_custom_call.1} parent=1 // pred_region
      %s129 = ssub.s32 128, 128
      %130 = vsyncadd [#allocation4], %s129
      %s132 = sshll.u32 [#allocation7], 4
      %s133 = int_to_ptr.vmem [resolvable:$true] %s132
      %135 = dma.vmem_to_hbm [thread:$0]  %s133, 128, %s2, [#allocation4]
    $region21: #{tpu_custom_call.1} parent=1 // pred_fallthru
      _
    // Predicated region
    $region22: #{tpu_custom_call.1} parent=1 // pred_check
      _
    $region23: #{tpu_custom_call.1} parent=1 // pred_check_branch
      %137 = sbr.rel (0) target = $region25
    $region24: #{tpu_custom_call.1} parent=1 // pred_region
      %138 = dma.done [#allocation4], 128
    $region25: #{tpu_custom_call.1} parent=1 // pred_fallthru
      _
    %139 = vsyncpa [#allocation3], 1
    %140 = vsyncpa [#allocation6], 1
    %141 = vsyncpa [#allocation4], 1

</llo_original>
